<compile_context>
chip_gen: v7x
topology: tpu7x:2x2x1
jax: 0.10.0
libtpu: 0.0.40
codegen_flags: <defaults>
</compile_context>

<pallas_src>
import functools

import jax
import jax.numpy as jnp
from jax.experimental import pallas as pl
from jax.experimental.pallas import tpu as pltpu


def _round_up(n, m):
    return ((n + m - 1) // m) * m


# ---------------------------------------------------------------------------
# One-time (hoisted) weight preparation: Toeplitz-unrolled convs + packing
# ---------------------------------------------------------------------------

def _conv1d_unrolled(w, lin, pad):
    """Dense matrix for a zero-padded, stride-1, dilation-1 Conv1d.

    w : (Cout, Cin, K).  Returns W of shape (Cin*lin, Cout*lout) with
    channel-major flattening on both sides, so that  y_flat = x_flat @ W
    reproduces  y[co, l] = sum_{ci,k} w[co, ci, k] * xpad[ci, l + k]
    (lout = lin + 2*pad - K + 1).  Cross-correlation, exactly as torch Conv1d.
    """
    cout, cin, K = w.shape
    lout = lin + 2 * pad - K + 1
    i = jnp.arange(lin)                              # input position
    l = jnp.arange(lout)                             # output position
    k = i[:, None] - l[None, :] + pad                # tap index, (lin, lout)
    valid = (k >= 0) & (k < K)
    kc = jnp.clip(k, 0, K - 1)
    taps = w[:, :, kc]                               # (cout, cin, lin, lout)
    taps = jnp.where(valid[None, None], taps, 0.0)
    # row = ci*lin + i, col = co*lout + l  (channel-major on both sides)
    return jnp.transpose(taps, (1, 2, 0, 3)).reshape(cin * lin, cout * lout)


def prepare_params(params, input_dim, padding=3, compute_dtype=jnp.bfloat16):
    """Build packed kernel operands ONCE (not per forward call).

    Produces:
      w_slab : (max_K, total_cols) compute_dtype, the four GEMM weight matrices
               packed side-by-side with 128-lane-aligned column starts.
      b_slab : (4, max_N) f32, per-layer bias rows (conv biases unrolled over
               their output length, channel-major).
    """
    w1, w2 = params["conv_w"]          # (C1, 1, K), (C2, C1, K)
    b1, b2 = params["conv_b"]          # (C1,), (C2,)
    wm1, wm2 = params["mlp_w"]         # (F2, H), (H, H)
    bm1, bm2 = params["mlp_b"]         # (H,), (H,)

    C1, Cin1, K = w1.shape
    C2 = w2.shape[0]
    L1 = input_dim + 2 * padding - K + 1
    L2 = L1 + 2 * padding - K + 1
    F1, F2 = C1 * L1, C2 * L2
    H = wm1.shape[1]
    assert wm1.shape[0] == F2, (wm1.shape, F2)

    W1u = _conv1d_unrolled(w1, input_dim, padding)   # (Cin1*Lin, F1) = (16, 72)
    W2u = _conv1d_unrolled(w2, L1, padding)          # (F1, F2)      = (72, 160)

    mats = [W1u, W2u, wm1, wm2]
    biases = [jnp.repeat(b1, L1), jnp.repeat(b2, L2), bm1, bm2]

    k_dims = tuple(int(m.shape[0]) for m in mats)    # (16, 72, 160, 32)
    n_dims = tuple(int(m.shape[1]) for m in mats)    # (72, 160, 32, 32)

    col_off, off = [], 0
    for n in n_dims:                                 # 128-lane aligned column starts
        col_off.append(off)
        off = _round_up(off + n, 128)
    total_cols = col_off[-1] + n_dims[-1]
    max_rows = max(k_dims)

    w_slab = jnp.zeros((max_rows, total_cols), compute_dtype)
    for m, o in zip(mats, col_off):
        w_slab = w_slab.at[:m.shape[0], o:o + m.shape[1]].set(m.astype(compute_dtype))

    b_slab = jnp.zeros((len(biases), max(n_dims)), jnp.float32)
    for r, b in enumerate(biases):
        b_slab = b_slab.at[r, :b.shape[0]].set(b.astype(jnp.float32))

    return {
        "w_slab": w_slab, "b_slab": b_slab,
        "k_dims": k_dims, "n_dims": n_dims, "col_off": tuple(col_off),
    }


# ---------------------------------------------------------------------------
# Fused Pallas kernel: 4-GEMM chain on the MXU (conv1, conv2, mlp1, mlp2)
# ---------------------------------------------------------------------------

def _fused_forward_kernel(x_ref, w_ref, b_ref, out_ref, *, k_dims, n_dims, col_off):
    """Whole ConvolutionalLatent forward for one batch block.

    x_ref   : (Bblk, Lin)            f32 input (channel dim of size 1 squeezed)
    w_ref   : (max_K, total_cols)    bf16 packed weight slab (W1u|W2u|Wm1|Wm2)
    b_ref   : (4, max_N)             f32 packed biases (one row per layer)
    out_ref : (Bblk, H)              f32 output

    Each layer is: bf16 GEMM (f32 accumulate) -> +bias -> ReLU, all in f32
    between GEMMs.  Static slices of the resident weight slab are lane-aligned
    (column starts are multiples of 128).
    """
    cdt = w_ref.dtype
    h = x_ref[...].astype(jnp.float32)
    for li in range(len(k_dims)):
        kr, n, co = k_dims[li], n_dims[li], col_off[li]
        w = w_ref[0:kr, co:co + n]                 # static, lane-aligned slab slice
        b = b_ref[li:li + 1, 0:n]                  # (1, n) f32
        h = jnp.dot(h.astype(cdt), w, preferred_element_type=jnp.float32)
        h = jnp.maximum(h + b, 0.0)                # bias + ReLU in f32 (v5e-safe)
    out_ref[...] = h.astype(out_ref.dtype)


# ---------------------------------------------------------------------------
# Wrapper: single pallas_call, 3 operands, optional batch grid
# ---------------------------------------------------------------------------

def convolutional_latent_forward(prepared, x):
    """ConvolutionalLatent.forward for the concrete 2-conv / 2-MLP configuration."""
    if x.ndim == 3:                                # accept already-unsqueezed (B, 1, L)
        x = x[:, 0, :]
    B, Lin = x.shape
    assert Lin == prepared["k_dims"][0], (Lin, prepared["k_dims"][0])
    H = prepared["n_dims"][-1]
    w_slab = prepared["w_slab"]
    b_slab = prepared["b_slab"]

    # Batch grid: one block up to 512 rows (working set is KB-scale, far below
    # VMEM on all generations); larger batches split into 512-row "parallel"
    # blocks so v7x's 2 TensorCores each take a share.  At B=2: grid=(1,).
    block_b = B if B <= 512 else 512
    pad_b = (-B) % block_b
    xb = x.astype(jnp.float32)
    if pad_b:
        xb = jnp.pad(xb, ((0, pad_b), (0, 0)))
    Bp = B + pad_b
    grid = (Bp // block_b,)

    kernel = functools.partial(
        _fused_forward_kernel,
        k_dims=prepared["k_dims"],
        n_dims=prepared["n_dims"],
        col_off=prepared["col_off"],
    )

    out = pl.pallas_call(
        kernel,
        out_shape=jax.ShapeDtypeStruct((Bp, H), jnp.float32),
        grid_spec=pltpu.PrefetchScalarGridSpec(
            num_scalar_prefetch=0,
            grid=grid,
            in_specs=[
                pl.BlockSpec((block_b, Lin), lambda i: (i, 0)),   # x batch block
                pl.BlockSpec(w_slab.shape, lambda i: (0, 0)),     # packed weights (resident)
                pl.BlockSpec(b_slab.shape, lambda i: (0, 0)),     # packed biases  (resident)
            ],
            out_specs=pl.BlockSpec((block_b, H), lambda i: (i, 0)),
        ),
        compiler_params=pltpu.CompilerParams(
            dimension_semantics=("parallel",)),
    )(xb, w_slab, b_slab)
    return out[:B]


# ---------------------------------------------------------------------------
# Deterministic parameter construction (matches module shapes / init style)
# ---------------------------------------------------------------------------

def _xavier_normal(key, shape, fan_in, fan_out):
    std = jnp.sqrt(2.0 / (fan_in + fan_out))
    return std * jax.random.normal(key, shape, dtype=jnp.float32)


def make_params(key, in_channels=1, channels=(4, 8), kernel_size=5,
                flat_dim=160, mlp_dim=32, nlayers=2):
    keys = jax.random.split(key, 8)
    params = {}
    # conv layers: xavier_normal_ weight, zeros bias (ConvLayer.init_modules)
    cs = (in_channels,) + tuple(channels)
    conv_w, conv_b = [], []
    for l in range(len(channels)):
        cin, cout = cs[l], cs[l + 1]
        w = _xavier_normal(keys[l], (cout, cin, kernel_size),
                           fan_in=cin * kernel_size, fan_out=cout * kernel_size)
        conv_w.append(w)
        conv_b.append(jnp.zeros((cout,), jnp.float32))
    params["conv_w"] = conv_w
    params["conv_b"] = conv_b
    # post-encoder MLP
    dims = [flat_dim] + [mlp_dim] * nlayers
    mlp_w, mlp_b = [], []
    for l in range(nlayers):
        w = _xavier_normal(keys[4 + l], (dims[l], dims[l + 1]),
                           fan_in=dims[l], fan_out=dims[l + 1])
        mlp_w.append(w)
        mlp_b.append(jnp.zeros((dims[l + 1],), jnp.float32))
    params["mlp_w"] = mlp_w
    params["mlp_b"] = mlp_b
    return params


# ---------------------------------------------------------------------------
# Pure-JAX reference (XLA ops, f32) for a numerical sanity check
# ---------------------------------------------------------------------------

def _reference_forward(params, x, padding=3):
    (w1, w2), (b1, b2) = params["conv_w"], params["conv_b"]
    (wm1, wm2), (bm1, bm2) = params["mlp_w"], params["mlp_b"]
    h = x[:, None, :]
    for w, b in ((w1, b1), (w2, b2)):
        h = jax.lax.conv_general_dilated(
            h, w, window_strides=(1,), padding=[(padding, padding)],
            dimension_numbers=("NCH", "OIH", "NCH"))
        h = jax.nn.relu(h + b[None, :, None])
    h = h.reshape(h.shape[0], -1)
    for w, b in ((wm1, bm1), (wm2, bm2)):
        h = jax.nn.relu(h @ w + b)
    return h


if __name__ == "__main__":
    key = jax.random.PRNGKey(0)
    k_param, k_x = jax.random.split(key)

    B, DIM = 2, 16
    CHANNELS = (4, 8)
    KSIZE = 5
    PAD = (KSIZE + 1) // 2                      # ceil(5/2) = 3
    L1 = DIM + 2 * PAD - KSIZE + 1              # 18
    L2 = L1 + 2 * PAD - KSIZE + 1               # 20
    FLAT = CHANNELS[-1] * L2                    # 160

    params = make_params(k_param, in_channels=1, channels=CHANNELS,
                         kernel_size=KSIZE, flat_dim=FLAT, mlp_dim=32, nlayers=2)
    prepared = prepare_params(params, input_dim=DIM, padding=PAD)   # one-time prep

    x = jax.random.normal(k_x, (B, DIM), dtype=jnp.float32)

    out = convolutional_latent_forward(prepared, x)
    out = jax.block_until_ready(out)
    assert out.shape == (B, 32), out.shape

    ref = _reference_forward(params, x, padding=PAD)
    # bf16 MXU operands with f32 accumulation vs f32 reference: per the review,
    # keep the tolerance at >= 1e-2 (2e-2 used for headroom).
    assert jnp.allclose(out, ref, rtol=2e-2, atol=2e-2), \
        float(jnp.max(jnp.abs(out - ref)))

    print("KERNEL_OK")
</pallas_src>

<mosaic_0001>
module attributes {stable_mosaic.version = 11 : i64} {
  func.func @_fused_forward_kernel(%arg0: i32, %arg1: memref<2x16xf32, #tpu.memory_space<vmem>>, %arg2: memref<160x544xbf16, #tpu.memory_space<vmem>>, %arg3: memref<4x160xf32, #tpu.memory_space<vmem>>, %arg4: memref<2x32xf32, #tpu.memory_space<vmem>>) attributes {dimension_semantics = [#tpu.dimension_semantics<parallel>], iteration_bounds = array<i64: 1>, scalar_prefetch = 0 : i64, scratch_operands = 0 : i64, tpu.core_type = #tpu.core_type<tc>, window_params = [{transform_indices = @transform_0, window_bounds = array<i64: 2, 16>}, {pipeline_mode = #tpu.pipeline_mode<synchronous>, transform_indices = @transform_1, window_bounds = array<i64: 160, 544>}, {pipeline_mode = #tpu.pipeline_mode<synchronous>, transform_indices = @transform_2, window_bounds = array<i64: 4, 160>}, {transform_indices = @transform_3, window_bounds = array<i64: 2, 32>}]} {
    %c0 = arith.constant 0 : index
    %c0_0 = arith.constant 0 : index
    %0 = vector.load %arg1[%c0, %c0_0] : memref<2x16xf32, #tpu.memory_space<vmem>>, vector<2x16xf32>
    %c0_1 = arith.constant 0 : index
    %c0_2 = arith.constant 0 : index
    %1 = vector.load %arg2[%c0_1, %c0_2] : memref<160x544xbf16, #tpu.memory_space<vmem>>, vector<16x72xbf16>
    %c0_3 = arith.constant 0 : index
    %c0_4 = arith.constant 0 : index
    %2 = vector.load %arg3[%c0_3, %c0_4] : memref<4x160xf32, #tpu.memory_space<vmem>>, vector<1x72xf32>
    %3 = arith.truncf %0 : vector<2x16xf32> to vector<2x16xbf16>
    %cst = arith.constant dense<0.000000e+00> : vector<2x72xf32>
    %4 = tpu.matmul %3, %1, %cst {dimension_numbers = #tpu.dot_dimension_numbers<[1], [0], [0], [1], [0, 0, 1, 1], [], []>} : vector<2x16xbf16>, vector<16x72xbf16>, vector<2x72xf32> -> vector<2x72xf32>
    %5 = vector.broadcast %2 : vector<1x72xf32> to vector<2x72xf32>
    %6 = arith.addf %4, %5 : vector<2x72xf32>
    %cst_5 = arith.constant 0.000000e+00 : f32
    %7 = vector.broadcast %cst_5 : f32 to vector<2x72xf32>
    %8 = arith.maximumf %6, %7 : vector<2x72xf32>
    %c0_6 = arith.constant 0 : index
    %c128 = arith.constant 128 : index
    %9 = vector.load %arg2[%c0_6, %c128] : memref<160x544xbf16, #tpu.memory_space<vmem>>, vector<72x160xbf16>
    %c1 = arith.constant 1 : index
    %c0_7 = arith.constant 0 : index
    %10 = vector.load %arg3[%c1, %c0_7] : memref<4x160xf32, #tpu.memory_space<vmem>>, vector<1x160xf32>
    %11 = arith.truncf %8 : vector<2x72xf32> to vector<2x72xbf16>
    %cst_8 = arith.constant dense<0.000000e+00> : vector<2x160xf32>
    %12 = tpu.matmul %11, %9, %cst_8 {dimension_numbers = #tpu.dot_dimension_numbers<[1], [0], [0], [1], [0, 0, 1, 1], [], []>} : vector<2x72xbf16>, vector<72x160xbf16>, vector<2x160xf32> -> vector<2x160xf32>
    %13 = vector.broadcast %10 : vector<1x160xf32> to vector<2x160xf32>
    %14 = arith.addf %12, %13 : vector<2x160xf32>
    %cst_9 = arith.constant 0.000000e+00 : f32
    %15 = vector.broadcast %cst_9 : f32 to vector<2x160xf32>
    %16 = arith.maximumf %14, %15 : vector<2x160xf32>
    %c0_10 = arith.constant 0 : index
    %c384 = arith.constant 384 : index
    %17 = vector.load %arg2[%c0_10, %c384] : memref<160x544xbf16, #tpu.memory_space<vmem>>, vector<160x32xbf16>
    %c2 = arith.constant 2 : index
    %c0_11 = arith.constant 0 : index
    %18 = vector.load %arg3[%c2, %c0_11] : memref<4x160xf32, #tpu.memory_space<vmem>>, vector<1x32xf32>
    %19 = arith.truncf %16 : vector<2x160xf32> to vector<2x160xbf16>
    %cst_12 = arith.constant dense<0.000000e+00> : vector<2x32xf32>
    %20 = tpu.matmul %19, %17, %cst_12 {dimension_numbers = #tpu.dot_dimension_numbers<[1], [0], [0], [1], [0, 0, 1, 1], [], []>} : vector<2x160xbf16>, vector<160x32xbf16>, vector<2x32xf32> -> vector<2x32xf32>
    %21 = vector.broadcast %18 : vector<1x32xf32> to vector<2x32xf32>
    %22 = arith.addf %20, %21 : vector<2x32xf32>
    %cst_13 = arith.constant 0.000000e+00 : f32
    %23 = vector.broadcast %cst_13 : f32 to vector<2x32xf32>
    %24 = arith.maximumf %22, %23 : vector<2x32xf32>
    %c0_14 = arith.constant 0 : index
    %c512 = arith.constant 512 : index
    %25 = vector.load %arg2[%c0_14, %c512] : memref<160x544xbf16, #tpu.memory_space<vmem>>, vector<32x32xbf16>
    %c3 = arith.constant 3 : index
    %c0_15 = arith.constant 0 : index
    %26 = vector.load %arg3[%c3, %c0_15] : memref<4x160xf32, #tpu.memory_space<vmem>>, vector<1x32xf32>
    %27 = arith.truncf %24 : vector<2x32xf32> to vector<2x32xbf16>
    %cst_16 = arith.constant dense<0.000000e+00> : vector<2x32xf32>
    %28 = tpu.matmul %27, %25, %cst_16 {dimension_numbers = #tpu.dot_dimension_numbers<[1], [0], [0], [1], [0, 0, 1, 1], [], []>} : vector<2x32xbf16>, vector<32x32xbf16>, vector<2x32xf32> -> vector<2x32xf32>
    %29 = vector.broadcast %26 : vector<1x32xf32> to vector<2x32xf32>
    %30 = arith.addf %28, %29 : vector<2x32xf32>
    %cst_17 = arith.constant 0.000000e+00 : f32
    %31 = vector.broadcast %cst_17 : f32 to vector<2x32xf32>
    %32 = arith.maximumf %30, %31 : vector<2x32xf32>
    %c0_18 = arith.constant 0 : index
    %c0_19 = arith.constant 0 : index
    %33 = vector.load %arg4[%c0_18, %c0_19] : memref<2x32xf32, #tpu.memory_space<vmem>>, vector<2x32xf32>
    tpu.vector_store %arg4[%c0_18, %c0_19], %32 {strides = array<i32>} : memref<2x32xf32, #tpu.memory_space<vmem>>, vector<2x32xf32>,
    return
  }
  func.func @transform_0(%arg0: i32) -> (i32, i32) {
    %c0_i32 = arith.constant 0 : i32
    %c0_i32_0 = arith.constant 0 : i32
    return %arg0, %c0_i32 : i32, i32
  }
  func.func @transform_1(%arg0: i32) -> (i32, i32) {
    %c0_i32 = arith.constant 0 : i32
    %c0_i32_0 = arith.constant 0 : i32
    %c0_i32_1 = arith.constant 0 : i32
    return %c0_i32, %c0_i32_0 : i32, i32
  }
  func.func @transform_2(%arg0: i32) -> (i32, i32) {
    %c0_i32 = arith.constant 0 : i32
    %c0_i32_0 = arith.constant 0 : i32
    %c0_i32_1 = arith.constant 0 : i32
    return %c0_i32, %c0_i32_0 : i32, i32
  }
  func.func @transform_3(%arg0: i32) -> (i32, i32) {
    %c0_i32 = arith.constant 0 : i32
    %c0_i32_0 = arith.constant 0 : i32
    return %arg0, %c0_i32 : i32, i32
  }
}

</mosaic_0001>

<llo_original>
// kernel: tpu_custom_call.1
$region0: #{tpu_custom_call.1}
  #allocation0 [shape = 'u32[]', space=smem, size = 0x4, offset = 0x4, fixed_abs, tag = 'smem constant byte address 0x4 - core index']
  #allocation1 [shape = 'u32[144,128]{1,0:T(1,128)}', space=vmem, size = 0x12000, scoped, tag = 'internal scratch']
  %s0 = inlined_call_operand.hbm [shape: f32[2,16], index: 0, kind: input, shape index: {}]
  %s1 = inlined_call_operand.hbm [shape: bf16[160,544], index: 1, kind: input, shape index: {}]
  %s2 = inlined_call_operand.hbm [shape: f32[4,160], index: 2, kind: input, shape index: {}]
  %s3 = inlined_call_operand.hbm [shape: f32[2,32], index: 3, kind: output, shape index: {}]
  %s4 = sld [smem:[#allocation0]]
  $region34: #{tpu_custom_call.1} parent=0
    _
  %s6 = ssub.s32 1, %s4
  %s7 = scalar_select 0, %s6, %s4
  $region1: #{tpu_custom_call.1} parent=0
    #allocation2 [shape = 'u8[1024]{0}', space=vmem, size = 0x400, scoped, tag = 'input window, operand 0, single buffered']
    #allocation3 [shape = 's32[1]{0}', space=sflag, size = 0x4, scoped, tag = 'scoped memory for tpu_custom_call.1']
    #allocation4 [shape = 's32[1]{0}', space=sflag, size = 0x4, scoped, tag = 'scoped memory for tpu_custom_call.1']
    #allocation5 [shape = 'u8[204800]{0}', space=vmem, size = 0x32000, scoped, tag = 'input window, operand 1, single buffered']
    #allocation6 [shape = 's32[1]{0}', space=sflag, size = 0x4, scoped, tag = 'scoped memory for tpu_custom_call.1']
    #allocation7 [shape = 'u8[4096]{0}', space=vmem, size = 0x1000, scoped, tag = 'input window, operand 2, single buffered']
    #allocation8 [shape = 'u8[1024]{0}', space=vmem, size = 0x400, scoped, tag = 'output window, operand 0, single buffered']
    %8 = vsyncpa [#allocation3], 0
    %9 = vsyncpa [#allocation6], 0
    %10 = vsyncpa [#allocation4], 0
    // Predicated region
    $region2: #{tpu_custom_call.1} parent=1 // pred_check
      _
    $region3: #{tpu_custom_call.1} parent=1 // pred_check_branch
      %12 = sbr.rel (0) target = $region5
    $region4: #{tpu_custom_call.1} parent=1 // pred_region
      %s14 = ssub.s32 32, 32
      %15 = vsyncadd [#allocation3], %s14
      %s17 = sshll.u32 [#allocation2], 4
      %s18 = int_to_ptr.vmem [resolvable:$true] %s17
      %20 = dma.hbm_to_vmem [thread:$0]  %s0, 32, %s18, [#allocation3]
    $region5: #{tpu_custom_call.1} parent=1 // pred_fallthru
      _
    // Predicated region
    $region6: #{tpu_custom_call.1} parent=1 // pred_check
      _
    $region7: #{tpu_custom_call.1} parent=1 // pred_check_branch
      %22 = sbr.rel (0) target = $region9
    $region8: #{tpu_custom_call.1} parent=1 // pred_region
      %s24 = ssub.s32 6400, 6400
      %25 = vsyncadd [#allocation6], %s24
      %s26 = sshll.u32 [#allocation5], 4
      %s27 = int_to_ptr.vmem [resolvable:$true] %s26
      %32 = dma.hbm_to_vmem [thread:$0]  %s1, 6400, %s27, [#allocation6], 320, 320, 20
    $region9: #{tpu_custom_call.1} parent=1 // pred_fallthru
      _
    // Predicated region
    $region10: #{tpu_custom_call.1} parent=1 // pred_check
      _
    $region11: #{tpu_custom_call.1} parent=1 // pred_check_branch
      %34 = sbr.rel (0) target = $region13
    $region12: #{tpu_custom_call.1} parent=1 // pred_region
      %s36 = ssub.s32 128, 128
      %37 = vsyncadd [#allocation6], %s36
      %s39 = sshll.u32 [#allocation7], 4
      %s40 = int_to_ptr.vmem [resolvable:$true] %s39
      %42 = dma.hbm_to_vmem [thread:$0]  %s2, 128, %s40, [#allocation6]
    $region13: #{tpu_custom_call.1} parent=1 // pred_fallthru
      _
    // Predicated region
    $region14: #{tpu_custom_call.1} parent=1 // pred_check
      _
    $region15: #{tpu_custom_call.1} parent=1 // pred_check_branch
      %44 = sbr.rel (0) target = $region17
    $region16: #{tpu_custom_call.1} parent=1 // pred_region
      %45 = dma.done [#allocation3], 32
    $region17: #{tpu_custom_call.1} parent=1 // pred_fallthru
      _
    // Predicated region
    $region18: #{tpu_custom_call.1} parent=1 // pred_check
      _
    $region19: #{tpu_custom_call.1} parent=1 // pred_check_branch
      %47 = sbr.rel (0) target = $region21
    $region20: #{tpu_custom_call.1} parent=1 // pred_region
      %48 = dma.done [#allocation6], 6400
    $region21: #{tpu_custom_call.1} parent=1 // pred_fallthru
      _
    // Predicated region
    $region22: #{tpu_custom_call.1} parent=1 // pred_check
      _
    $region23: #{tpu_custom_call.1} parent=1 // pred_check_branch
      %50 = sbr.rel (0) target = $region25
    $region24: #{tpu_custom_call.1} parent=1 // pred_region
      %51 = dma.done [#allocation6], 128
    $region25: #{tpu_custom_call.1} parent=1 // pred_fallthru
      _
    %v53 = vld [vmem:[#allocation2] sm:$0x3]
    %v54 = vld [vmem:[#allocation5] sm:$0xf]
    %v55 = vld [vmem:[#allocation5 + $0x14] sm:$0xf]
    %v56 = vld [vmem:[#allocation7] sm:$0x1]
    %v57 = vpack.c.bf16 %v53, %v53
    %v58 = vlaneseq
    %v59 = vshrl.u32 %v58, 7
    %v60 = vsub.s32 0, %v59
    %v61 = vrot.slane %v56, %v60
    %v64 = vunpack.c.l.b16 %v54
    %v65 = vunpack.c.l.b16 %v55
    %v66 = vpack.c.b16 %v65, %v64
    %vm68 = vcmask 130048
    %v70 = vsel %vm68, %v57, 0
    %72 = vmatprep.subr.bf16.mxu0 0
    %73 = vmatpush1.bf16.msra.mxu0 %v66
    %74 = vmatprep.subr.bf16.mxu0 0
    %75 = vmatpush1.bf16.msra.mxu0 0
    %76 = vmatprep.subr.bf16.mxu0 0
    %77 = vmatpush1.bf16.msra.mxu0 0
    %78 = vmatprep.subr.bf16.mxu0 0
    %79 = vmatpush1.bf16.msra.mxu0 0
    %80 = vmatprep.subr.bf16.mxu0 0
    %81 = vmatpush1.bf16.msra.mxu0 0
    %82 = vmatprep.subr.bf16.mxu0 0
    %83 = vmatpush1.bf16.msra.mxu0 0
    %84 = vmatprep.subr.bf16.mxu0 0
    %85 = vmatpush1.bf16.msra.mxu0 0
    %86 = vmatprep.subr.bf16.mxu0 0
    %87 = vmatpush1.bf16.msra.mxu0 0
    %88 = vmatprep.subr.bf16.mxu0 0
    %89 = vmatpush1.bf16.msra.mxu0 0
    %90 = vmatprep.subr.bf16.mxu0 0
    %91 = vmatpush1.bf16.msra.mxu0 0
    %92 = vmatprep.subr.bf16.mxu0 0
    %93 = vmatpush1.bf16.msra.mxu0 0
    %94 = vmatprep.subr.bf16.mxu0 0
    %95 = vmatpush1.bf16.msra.mxu0 0
    %96 = vmatprep.subr.bf16.mxu0 0
    %97 = vmatpush1.bf16.msra.mxu0 0
    %98 = vmatprep.subr.bf16.mxu0 0
    %99 = vmatpush1.bf16.msra.mxu0 0
    %100 = vmatprep.subr.bf16.mxu0 0
    %101 = vmatpush1.bf16.msra.mxu0 0
    %102 = vmatprep.subr.bf16.mxu0 0
    %103 = vmatpush1.bf16.msra.mxu0 0
    %104 = vmatprep.mubr.bf16.mxu0 0
    %105 = vmatmul.mubr.bf16.gmra.mrb[0].mxu0 %v70
    %v106 = vpop.f32.mrb[0].mxu0
    %v107 = vadd.f32 %v61, %v106
    %v108 = vpop.f32.mrb[0].mxu0
    %v109 = vpop.f32.mrb[0].mxu0
    %v110 = vpop.f32.mrb[0].mxu0
    %111 = vdwg.mxu0
    %v112 = vmax.f32 %v107, 0.0
    %v113 = vld [vmem:[#allocation5 + $0x4] sm:$0xff]
    %v114 = vld [vmem:[#allocation5 + $0x18] sm:$0xff]
    %v115 = vld [vmem:[#allocation5 + $0x2c] sm:$0xff]
    %v116 = vld [vmem:[#allocation5 + $0x40] sm:$0xff]
    %v117 = vld [vmem:[#allocation5 + $0x54] sm:$0xff]
    %v118 = vld [vmem:[#allocation5 + $0x68] sm:$0xff]
    %v119 = vld [vmem:[#allocation5 + $0x7c] sm:$0xff]
    %v120 = vld [vmem:[#allocation5 + $0x90] sm:$0xff]
    %v121 = vld [vmem:[#allocation5 + $0xa4] sm:$0xff]
    %s122 = scalar_lea.vmem [#allocation7], 1
    %v123 = vld [vmem:[%s122] ss:$4 sm:$0x3]
    %v124 = vpack.c.bf16 %v112, %v112
    %v126 = vlaneseq
    %v127 = vshrl.u32 %v126, 7
    %v128 = vsub.s32 0, %v127
    %v129 = vrot.slane %v123, %v128
    %v130 = vlaneseq
    %v131 = vshrl.u32 %v130, 7
    %v132 = vsub.s32 1, %v131
    %v133 = vrot.slane %v123, %v132
    %v145 = vunpack.c.l.b16 %v113
    %v146 = vunpack.c.h.b16 %v113
    %v147 = vunpack.c.l.b16 %v114
    %v148 = vunpack.c.h.b16 %v114
    %v149 = vunpack.c.l.b16 %v115
    %v150 = vunpack.c.h.b16 %v115
    %v151 = vunpack.c.l.b16 %v116
    %v152 = vunpack.c.h.b16 %v116
    %v153 = vunpack.c.l.b16 %v117
    %v154 = vunpack.c.h.b16 %v117
    %v155 = vunpack.c.l.b16 %v118
    %v156 = vunpack.c.h.b16 %v118
    %v157 = vunpack.c.l.b16 %v119
    %v158 = vunpack.c.h.b16 %v119
    %v159 = vunpack.c.l.b16 %v120
    %v160 = vunpack.c.h.b16 %v120
    %v161 = vunpack.c.l.b16 %v121
    %v162 = vunpack.c.h.b16 %v121
    %v163 = vpack.c.b16 %v147, %v145
    %v164 = vpack.c.b16 %v148, %v146
    %v165 = vpack.c.b16 %v151, %v149
    %v166 = vpack.c.b16 %v152, %v150
    %v167 = vpack.c.b16 %v155, %v153
    %v168 = vpack.c.b16 %v156, %v154
    %v169 = vpack.c.b16 %v159, %v157
    %v170 = vpack.c.b16 %v160, %v158
    %v171 = vpack.c.b16 %v161, %v161
    %v172 = vpack.c.b16 %v162, %v162
    %vm181 = vcmask 588800
    %v183 = vsel %vm181, %v124, 0
    %vm185 = vcmask 1043456
    %v187 = vsel %vm185, %v171, 0
    %v190 = vsel %vm185, %v172, 0
    %192 = vmatprep.subr.bf16.mxu0 %v164
    %193 = vmatpush1.bf16.msra.mxu0 %v163
    %194 = vmatprep.subr.bf16.mxu0 %v166
    %195 = vmatpush1.bf16.msra.mxu0 %v165
    %196 = vmatprep.subr.bf16.mxu0 %v168
    %197 = vmatpush1.bf16.msra.mxu0 %v167
    %198 = vmatprep.subr.bf16.mxu0 %v170
    %199 = vmatpush1.bf16.msra.mxu0 %v169
    %200 = vmatprep.subr.bf16.mxu0 %v190
    %201 = vmatpush1.bf16.msra.mxu0 %v187
    %202 = vmatprep.subr.bf16.mxu0 0
    %203 = vmatpush1.bf16.msra.mxu0 0
    %204 = vmatprep.subr.bf16.mxu0 0
    %205 = vmatpush1.bf16.msra.mxu0 0
    %206 = vmatprep.subr.bf16.mxu0 0
    %207 = vmatpush1.bf16.msra.mxu0 0
    %208 = vmatprep.subr.bf16.mxu0 0
    %209 = vmatpush1.bf16.msra.mxu0 0
    %210 = vmatprep.subr.bf16.mxu0 0
    %211 = vmatpush1.bf16.msra.mxu0 0
    %212 = vmatprep.subr.bf16.mxu0 0
    %213 = vmatpush1.bf16.msra.mxu0 0
    %214 = vmatprep.subr.bf16.mxu0 0
    %215 = vmatpush1.bf16.msra.mxu0 0
    %216 = vmatprep.subr.bf16.mxu0 0
    %217 = vmatpush1.bf16.msra.mxu0 0
    %218 = vmatprep.subr.bf16.mxu0 0
    %219 = vmatpush1.bf16.msra.mxu0 0
    %220 = vmatprep.subr.bf16.mxu0 0
    %221 = vmatpush1.bf16.msra.mxu0 0
    %222 = vmatprep.subr.bf16.mxu0 0
    %223 = vmatpush1.bf16.msra.mxu0 0
    %224 = vmatprep.mubr.bf16.mxu0 0
    %225 = vmatmul.mubr.bf16.gmra.mrb[0].mxu0 %v183
    %v226 = vpop.f32.mrb[0].mxu0
    %v227 = vadd.f32 %v129, %v226
    %v228 = vpop.f32.mrb[0].mxu0
    %v229 = vadd.f32 %v133, %v228
    %v230 = vpop.f32.mrb[0].mxu0
    %v231 = vpop.f32.mrb[0].mxu0
    %232 = vdwg.mxu0
    %v233 = vmax.f32 %v227, 0.0
    %v234 = vmax.f32 %v229, 0.0
    %v235 = vld [vmem:[#allocation5 + $0xc] sm:$0xf]
    %v236 = vld [vmem:[#allocation5 + $0x20] sm:$0xf]
    %v237 = vld [vmem:[#allocation5 + $0x34] sm:$0xf]
    %v238 = vld [vmem:[#allocation5 + $0x48] sm:$0xf]
    %v239 = vld [vmem:[#allocation5 + $0x5c] sm:$0xf]
    %v240 = vld [vmem:[#allocation5 + $0x70] sm:$0xf]
    %v241 = vld [vmem:[#allocation5 + $0x84] sm:$0xf]
    %v242 = vld [vmem:[#allocation5 + $0x98] sm:$0xf]
    %v243 = vld [vmem:[#allocation5 + $0xac] sm:$0xf]
    %v244 = vld [vmem:[#allocation5 + $0xc0] sm:$0xf]
    %v245 = vld [vmem:[#allocation5 + $0xd4] sm:$0xf]
    %v246 = vld [vmem:[#allocation5 + $0xe8] sm:$0xf]
    %v247 = vld [vmem:[#allocation5 + $0xfc] sm:$0xf]
    %v248 = vld [vmem:[#allocation5 + $0x110] sm:$0xf]
    %v249 = vld [vmem:[#allocation5 + $0x124] sm:$0xf]
    %v250 = vld [vmem:[#allocation5 + $0x138] sm:$0xf]
    %v251 = vld [vmem:[#allocation5 + $0x14c] sm:$0xf]
    %v252 = vld [vmem:[#allocation5 + $0x160] sm:$0xf]
    %v253 = vld [vmem:[#allocation5 + $0x174] sm:$0xf]
    %v254 = vld [vmem:[#allocation5 + $0x188] sm:$0xf]
    %v255 = vld [vmem:[#allocation7 + $0x2] sm:$0x1]
    %v256 = vpack.c.bf16 %v233, %v233
    %v257 = vpack.c.bf16 %v234, %v234
    %v258 = vlaneseq
    %v259 = vshrl.u32 %v258, 7
    %v260 = vsub.s32 0, %v259
    %v261 = vrot.slane %v255, %v260
    %v282 = vunpack.c.l.b16 %v235
    %v283 = vunpack.c.l.b16 %v236
    %v284 = vunpack.c.l.b16 %v237
    %v285 = vunpack.c.l.b16 %v238
    %v286 = vunpack.c.l.b16 %v239
    %v287 = vunpack.c.l.b16 %v240
    %v288 = vunpack.c.l.b16 %v241
    %v289 = vunpack.c.l.b16 %v242
    %v290 = vunpack.c.l.b16 %v243
    %v291 = vunpack.c.l.b16 %v244
    %v292 = vunpack.c.l.b16 %v245
    %v293 = vunpack.c.l.b16 %v246
    %v294 = vunpack.c.l.b16 %v247
    %v295 = vunpack.c.l.b16 %v248
    %v296 = vunpack.c.l.b16 %v249
    %v297 = vunpack.c.l.b16 %v250
    %v298 = vunpack.c.l.b16 %v251
    %v299 = vunpack.c.l.b16 %v252
    %v300 = vunpack.c.l.b16 %v253
    %v301 = vunpack.c.l.b16 %v254
    %v302 = vpack.c.b16 %v283, %v282
    %v303 = vpack.c.b16 %v285, %v284
    %v304 = vpack.c.b16 %v287, %v286
    %v305 = vpack.c.b16 %v289, %v288
    %v306 = vpack.c.b16 %v291, %v290
    %v307 = vpack.c.b16 %v293, %v292
    %v308 = vpack.c.b16 %v295, %v294
    %v309 = vpack.c.b16 %v297, %v296
    %v310 = vpack.c.b16 %v299, %v298
    %v311 = vpack.c.b16 %v301, %v300
    %vm322 = vcmask 261120
    %v324 = vsel %vm322, %v257, 0
    %326 = vmatprep.subr.bf16.mxu0 0
    %327 = vmatpush1.bf16.msra.mxu0 %v302
    %328 = vmatprep.subr.bf16.mxu0 0
    %329 = vmatpush1.bf16.msra.mxu0 %v303
    %330 = vmatprep.subr.bf16.mxu0 0
    %331 = vmatpush1.bf16.msra.mxu0 %v304
    %332 = vmatprep.subr.bf16.mxu0 0
    %333 = vmatpush1.bf16.msra.mxu0 %v305
    %334 = vmatprep.subr.bf16.mxu0 0
    %335 = vmatpush1.bf16.msra.mxu0 %v306
    %336 = vmatprep.subr.bf16.mxu0 0
    %337 = vmatpush1.bf16.msra.mxu0 %v307
    %338 = vmatprep.subr.bf16.mxu0 0
    %339 = vmatpush1.bf16.msra.mxu0 %v308
    %340 = vmatprep.subr.bf16.mxu0 0
    %341 = vmatpush1.bf16.msra.mxu0 %v309
    %342 = vmatprep.subr.bf16.mxu0 0
    %343 = vmatpush1.bf16.msra.mxu0 %v310
    %344 = vmatprep.subr.bf16.mxu0 0
    %345 = vmatpush1.bf16.msra.mxu0 %v311
    %346 = vmatprep.subr.bf16.mxu0 0
    %347 = vmatpush1.bf16.msra.mxu0 0
    %348 = vmatprep.subr.bf16.mxu0 0
    %349 = vmatpush1.bf16.msra.mxu0 0
    %350 = vmatprep.subr.bf16.mxu0 0
    %351 = vmatpush1.bf16.msra.mxu0 0
    %352 = vmatprep.subr.bf16.mxu0 0
    %353 = vmatpush1.bf16.msra.mxu0 0
    %354 = vmatprep.subr.bf16.mxu0 0
    %355 = vmatpush1.bf16.msra.mxu0 0
    %356 = vmatprep.subr.bf16.mxu0 0
    %357 = vmatpush1.bf16.msra.mxu0 0
    %358 = vmatprep.mubr.bf16.mxu0 %v324
    %359 = vmatmul.mubr.bf16.gmra.mrb[0].mxu0 %v256
    %v360 = vpop.f32.mrb[0].mxu0
    %v361 = vadd.f32 %v261, %v360
    %v362 = vpop.f32.mrb[0].mxu0
    %v363 = vpop.f32.mrb[0].mxu0
    %v364 = vpop.f32.mrb[0].mxu0
    %365 = vdwg.mxu0
    %v366 = vmax.f32 %v361, 0.0
    %v367 = vld [vmem:[#allocation5 + $0x10] sm:$0xf]
    %v368 = vld [vmem:[#allocation5 + $0x24] sm:$0xf]
    %v369 = vld [vmem:[#allocation5 + $0x38] sm:$0xf]
    %v370 = vld [vmem:[#allocation5 + $0x4c] sm:$0xf]
    %v371 = vld [vmem:[#allocation7 + $0x3] sm:$0x1]
    %v372 = vpack.c.bf16 %v366, %v366
    %v373 = vlaneseq
    %v374 = vshrl.u32 %v373, 7
    %v375 = vsub.s32 0, %v374
    %v376 = vrot.slane %v371, %v375
    %v381 = vunpack.c.l.b16 %v367
    %v382 = vunpack.c.l.b16 %v368
    %v383 = vunpack.c.l.b16 %v369
    %v384 = vunpack.c.l.b16 %v370
    %v385 = vpack.c.b16 %v382, %v381
    %v386 = vpack.c.b16 %v384, %v383
    %v390 = vsel %vm322, %v372, 0
    %392 = vmatprep.subr.bf16.mxu0 0
    %393 = vmatpush1.bf16.msra.mxu0 %v385
    %394 = vmatprep.subr.bf16.mxu0 0
    %395 = vmatpush1.bf16.msra.mxu0 %v386
    %396 = vmatprep.subr.bf16.mxu0 0
    %397 = vmatpush1.bf16.msra.mxu0 0
    %398 = vmatprep.subr.bf16.mxu0 0
    %399 = vmatpush1.bf16.msra.mxu0 0
    %400 = vmatprep.subr.bf16.mxu0 0
    %401 = vmatpush1.bf16.msra.mxu0 0
    %402 = vmatprep.subr.bf16.mxu0 0
    %403 = vmatpush1.bf16.msra.mxu0 0
    %404 = vmatprep.subr.bf16.mxu0 0
    %405 = vmatpush1.bf16.msra.mxu0 0
    %406 = vmatprep.subr.bf16.mxu0 0
    %407 = vmatpush1.bf16.msra.mxu0 0
    %408 = vmatprep.subr.bf16.mxu0 0
    %409 = vmatpush1.bf16.msra.mxu0 0
    %410 = vmatprep.subr.bf16.mxu0 0
    %411 = vmatpush1.bf16.msra.mxu0 0
    %412 = vmatprep.subr.bf16.mxu0 0
    %413 = vmatpush1.bf16.msra.mxu0 0
    %414 = vmatprep.subr.bf16.mxu0 0
    %415 = vmatpush1.bf16.msra.mxu0 0
    %416 = vmatprep.subr.bf16.mxu0 0
    %417 = vmatpush1.bf16.msra.mxu0 0
    %418 = vmatprep.subr.bf16.mxu0 0
    %419 = vmatpush1.bf16.msra.mxu0 0
    %420 = vmatprep.subr.bf16.mxu0 0
    %421 = vmatpush1.bf16.msra.mxu0 0
    %422 = vmatprep.subr.bf16.mxu0 0
    %423 = vmatpush1.bf16.msra.mxu0 0
    %424 = vmatprep.mubr.bf16.mxu0 0
    %425 = vmatmul.mubr.bf16.gmra.mrb[0].mxu0 %v390
    %v426 = vpop.f32.mrb[0].mxu0
    %v427 = vadd.f32 %v376, %v426
    %v428 = vpop.f32.mrb[0].mxu0
    %v429 = vpop.f32.mrb[0].mxu0
    %v430 = vpop.f32.mrb[0].mxu0
    %431 = vdwg.mxu0
    %v432 = vmax.f32 %v427, 0.0
    %vm433 = vcmask 254976
    %434 = vst.msk [vmem:[#allocation8] sm:$0x3] %vm433, %v432
    // Predicated region
    $region26: #{tpu_custom_call.1} parent=1 // pred_check
      _
    $region27: #{tpu_custom_call.1} parent=1 // pred_check_branch
      %436 = sbr.rel (0) target = $region29
    $region28: #{tpu_custom_call.1} parent=1 // pred_region
      %s438 = ssub.s32 32, 32
      %439 = vsyncadd [#allocation4], %s438
      %s441 = sshll.u32 [#allocation8], 4
      %s442 = int_to_ptr.vmem [resolvable:$true] %s441
      %444 = dma.vmem_to_hbm [thread:$0]  %s442, 32, %s3, [#allocation4]
    $region29: #{tpu_custom_call.1} parent=1 // pred_fallthru
      _
    // Predicated region
    $region30: #{tpu_custom_call.1} parent=1 // pred_check
      _
    $region31: #{tpu_custom_call.1} parent=1 // pred_check_branch
      %446 = sbr.rel (0) target = $region33
    $region32: #{tpu_custom_call.1} parent=1 // pred_region
      %447 = dma.done [#allocation4], 32
    $region33: #{tpu_custom_call.1} parent=1 // pred_fallthru
      _
    %448 = vsyncpa [#allocation3], 1
    %449 = vsyncpa [#allocation6], 1
    %450 = vsyncpa [#allocation4], 1

</llo_original>
